<compile_context>
chip_gen: v6e
topology: v6e:2x2x1
jax: 0.10.0
libtpu: 0.0.40
codegen_flags: <defaults>
</compile_context>

<pallas_src>
from functools import partial

import numpy as np
import jax
import jax.numpy as jnp
from jax.experimental import pallas as pl
from jax.experimental.pallas import tpu as pltpu


def get_sobel_kernel(k=3):
    rng = np.linspace(-(k // 2), k // 2, k)
    x, y = np.meshgrid(rng, rng)
    num = x
    den = x ** 2 + y ** 2
    den[:, k // 2] = 1
    return num / den


def _boundary_masks(H, W):
    """(4, H*W) f32 validity masks for the +-1 vertical / horizontal taps."""
    h_idx, w_idx = np.meshgrid(np.arange(H), np.arange(W), indexing="ij")
    h = h_idx.reshape(-1)
    w = w_idx.reshape(-1)
    return np.stack([
        (h >= 1),          # vertical  -1 tap (h-1) inside image
        (h <= H - 2),      # vertical  +1 tap (h+1) inside image
        (w >= 1),          # horizontal -1 tap (w-1) inside image
        (w <= W - 2),      # horizontal +1 tap (w+1) inside image
    ]).astype(np.float32)


def _vmem_capacity_bytes():
    try:
        cap = int(getattr(pltpu.get_tpu_info(), "vmem_capacity_bytes", 0))
        if cap > 0:
            return cap
    except Exception:
        pass
    return 64 * 1024 * 1024     # conservative fallback (v7x per-TensorCore)


def _choose_row_block(nr, hw, in_itemsize):
    """Rows (of N*C) per grid step, padded row count, per-gen VMEM limit."""
    cap = _vmem_capacity_bytes()
    # ~75% of physical VMEM, clamped: 48 MiB on v7x (64 MiB), 96 MiB on
    # v5e/v6e (128 MiB), never below the 32 MiB scoped default.
    vmem_limit = int(min(max(cap * 3 // 4, 32 * 1024 * 1024),
                         100 * 1024 * 1024))
    # Per-row VMEM: double-buffered native-dtype input block + ~8 live f32
    # temps (x, up/dn, s, d, rolled copies, gx/gy, sq/val; compiler reuses).
    per_row = hw * (2 * in_itemsize + 8 * 4) + 64
    sub = 16 if in_itemsize == 2 else 8          # sublane packing granularity
    budget = (vmem_limit * 3) // 5               # leave headroom for scratch
    rb = max(sub, (budget // per_row) // sub * sub)
    nr_sub = ((nr + sub - 1) // sub) * sub
    if nr_sub >= 2 * sub:                        # >=2 grid steps for 2-TC v7x
        rb = min(rb, max(sub, (nr_sub // 2) // sub * sub))
    rb = min(rb, nr_sub)
    nr_pad = ((nr + rb - 1) // rb) * rb
    return rb, nr_pad, vmem_limit


def _si_kernel(masks_ref, x_ref, o_ref, *, H, W):
    # masks_ref : (4, HW)  f32 boundary-validity masks (resident, tiny)
    # x_ref     : (RB, HW) native-dtype rows, one (n, c) image per row
    # o_ref     : (RB, 1)  f32 per-(n, c) spatial information
    HW = H * W
    x = x_ref[...].astype(jnp.float32)                       # (RB, HW)
    m = masks_ref[...]                                       # (4, HW)
    m_top, m_bot = m[0:1, :], m[1:2, :]
    m_lft, m_rgt = m[2:3, :], m[3:4, :]

    # Vertical neighbours via lane rotation; wraparound is zeroed by the masks.
    up = pltpu.roll(x, shift=W % HW, axis=1) * m_top         # x[h-1, w]
    dn = pltpu.roll(x, shift=(HW - W) % HW, axis=1) * m_bot  # x[h+1, w]

    s = x + 0.5 * (up + dn)        # vertical smooth [0.5, 1, 0.5]
    d = dn - up                    # vertical diff   [-1, 0, 1]

    # Horizontal neighbours of the two separable intermediates.
    s_l = pltpu.roll(s, shift=1 % HW, axis=1) * m_lft        # s[h, w-1]
    s_r = pltpu.roll(s, shift=(HW - 1) % HW, axis=1) * m_rgt # s[h, w+1]
    d_l = pltpu.roll(d, shift=1 % HW, axis=1) * m_lft
    d_r = pltpu.roll(d, shift=(HW - 1) % HW, axis=1) * m_rgt

    gx = s_r - s_l                 # horizontal [-1, 0, 1]
    gy = d + 0.5 * (d_l + d_r)     # horizontal [0.5, 1, 0.5]

    sq = gx * gx + gy * gy         # value^2
    val = jnp.sqrt(sq)             # EUP sqrt

    inv = 1.0 / float(HW)
    # TODO(synk): if the 2 XLUs ever become the binding slot, route these two
    # lane reductions through the idle MXU (dot against a ones(HW, 1) column).
    s1 = jnp.sum(val, axis=-1, keepdims=True) * inv          # mean(value)
    s2 = jnp.sum(sq, axis=-1, keepdims=True) * inv           # mean(value^2)
    # Matches the torch formula E[v^2]-E[v]^2; clamp fp-rounding negatives.
    var = jnp.maximum(s2 - s1 * s1, 0.0)
    o_ref[...] = jnp.sqrt(var)


def si_forward(x, k_sobel=3):
    """x: (N, C, H, W) float array -> (N, C) float32 spatial information."""
    assert k_sobel == 3, "padding=1 in the reference implies a 3x3 kernel"
    sobel = get_sobel_kernel(k_sobel)
    assert np.allclose(sobel, np.outer([0.5, 1.0, 0.5], [-1.0, 0.0, 1.0])), \
        "kernel hard-codes the separable form of get_sobel_kernel(3)"

    N, C, H, W = x.shape
    HW = H * W
    if not jnp.issubdtype(x.dtype, jnp.floating):
        x = x.astype(jnp.float32)

    # Free layout change: NCHW is contiguous, so (N, C, H, W) -> (N*C, H*W)
    # puts H*W lane-dense and packs all channels densely onto sublanes.
    NR = N * C
    xf = x.reshape(NR, HW)

    RB, NRP, vmem_limit = _choose_row_block(NR, HW, x.dtype.itemsize)
    if NRP != NR:
        xf = jnp.pad(xf, ((0, NRP - NR), (0, 0)))    # zero rows -> output 0

    masks = jnp.asarray(_boundary_masks(H, W))       # (4, HW) f32

    kernel = partial(_si_kernel, H=H, W=W)
    out = pl.pallas_call(
        kernel,
        out_shape=jax.ShapeDtypeStruct((NRP, 1), jnp.float32),
        grid=(NRP // RB,),
        in_specs=[
            pl.BlockSpec((4, HW), lambda i: (0, 0)),     # boundary masks
            pl.BlockSpec((RB, HW), lambda i: (i, 0)),    # rows, native dtype
        ],
        out_specs=pl.BlockSpec((RB, 1), lambda i: (i, 0)),
        compiler_params=pltpu.CompilerParams(
            dimension_semantics=("parallel",),
            vmem_limit_bytes=vmem_limit),
    )(masks, xf)
    return out[:NR, 0].reshape(N, C)


def si_reference(x, k_sobel=3):
    """Plain-JAX reference of the torch forward (for correctness check)."""
    sobel = get_sobel_kernel(k_sobel)
    N, C, H, W = x.shape
    xp = jnp.pad(x.astype(jnp.float32), ((0, 0), (0, 0), (1, 1), (1, 1)))
    gx = sum(float(sobel[i, j]) * xp[:, :, i:i + H, j:j + W]
             for i in range(3) for j in range(3) if sobel[i, j] != 0.0)
    gy = sum(float(sobel.T[i, j]) * xp[:, :, i:i + H, j:j + W]
             for i in range(3) for j in range(3) if sobel.T[i, j] != 0.0)
    val = jnp.sqrt(gx * gx + gy * gy)
    denom = H * W
    out = (jnp.sum(val ** 2, axis=(2, 3)) / denom
           - (jnp.sum(val, axis=(2, 3)) / denom) ** 2)
    return jnp.sqrt(out)


if __name__ == "__main__":
    key = jax.random.PRNGKey(0)
    N, C, H, W = 2, 4, 16, 16
    x = jax.random.normal(key, (N, C, H, W), dtype=jnp.float32)

    out = jax.block_until_ready(si_forward(x))
    ref = jax.block_until_ready(si_reference(x))
    assert out.shape == (N, C), out.shape
    np.testing.assert_allclose(np.asarray(out), np.asarray(ref),
                               rtol=1e-5, atol=1e-5)

    # 16-bit I/O path (native-dtype DMA; math stays f32 in-kernel).
    x16 = x.astype(jnp.bfloat16)
    out16 = jax.block_until_ready(si_forward(x16))
    ref16 = jax.block_until_ready(si_reference(x16))
    np.testing.assert_allclose(np.asarray(out16), np.asarray(ref16),
                               rtol=2e-2, atol=2e-2)

    print("KERNEL_OK")
</pallas_src>

<mosaic_0001>
module attributes {stable_mosaic.version = 11 : i64} {
  func.func @_si_kernel(%arg0: i32, %arg1: memref<4x256xf32, #tpu.memory_space<vmem>>, %arg2: memref<8x256xf32, #tpu.memory_space<vmem>>, %arg3: memref<8x1xf32, #tpu.memory_space<vmem>>) attributes {dimension_semantics = [#tpu.dimension_semantics<parallel>], iteration_bounds = array<i64: 1>, scalar_prefetch = 0 : i64, scratch_operands = 0 : i64, tpu.core_type = #tpu.core_type<tc>, window_params = [{pipeline_mode = #tpu.pipeline_mode<synchronous>, transform_indices = @transform_0, window_bounds = array<i64: 4, 256>}, {transform_indices = @transform_1, window_bounds = array<i64: 8, 256>}, {transform_indices = @transform_2, window_bounds = array<i64: 8, 1>}]} {
    %c0 = arith.constant 0 : index
    %c0_0 = arith.constant 0 : index
    %0 = vector.load %arg2[%c0, %c0_0] : memref<8x256xf32, #tpu.memory_space<vmem>>, vector<8x256xf32>
    %c0_1 = arith.constant 0 : index
    %c0_2 = arith.constant 0 : index
    %1 = vector.load %arg1[%c0_1, %c0_2] : memref<4x256xf32, #tpu.memory_space<vmem>>, vector<4x256xf32>
    %2 = vector.extract_strided_slice %1 {offsets = [0, 0], sizes = [1, 256], strides = [1, 1]} : vector<4x256xf32> to vector<1x256xf32>
    %3 = vector.extract_strided_slice %1 {offsets = [1, 0], sizes = [1, 256], strides = [1, 1]} : vector<4x256xf32> to vector<1x256xf32>
    %4 = vector.extract_strided_slice %1 {offsets = [2, 0], sizes = [1, 256], strides = [1, 1]} : vector<4x256xf32> to vector<1x256xf32>
    %5 = vector.extract_strided_slice %1 {offsets = [3, 0], sizes = [1, 256], strides = [1, 1]} : vector<4x256xf32> to vector<1x256xf32>
    %c16_i32 = arith.constant 16 : i32
    %6 = tpu.dynamic_rotate %0 by %c16_i32 dim 1 : vector<8x256xf32>, i32 -> vector<8x256xf32>
    %7 = vector.broadcast %2 : vector<1x256xf32> to vector<8x256xf32>
    %8 = arith.mulf %6, %7 : vector<8x256xf32>
    %c240_i32 = arith.constant 240 : i32
    %9 = tpu.dynamic_rotate %0 by %c240_i32 dim 1 : vector<8x256xf32>, i32 -> vector<8x256xf32>
    %10 = vector.broadcast %3 : vector<1x256xf32> to vector<8x256xf32>
    %11 = arith.mulf %9, %10 : vector<8x256xf32>
    %12 = arith.addf %8, %11 : vector<8x256xf32>
    %cst = arith.constant 5.000000e-01 : f32
    %13 = vector.broadcast %cst : f32 to vector<8x256xf32>
    %14 = arith.mulf %13, %12 : vector<8x256xf32>
    %15 = arith.addf %0, %14 : vector<8x256xf32>
    %16 = arith.subf %11, %8 : vector<8x256xf32>
    %c1_i32 = arith.constant 1 : i32
    %17 = tpu.dynamic_rotate %15 by %c1_i32 dim 1 : vector<8x256xf32>, i32 -> vector<8x256xf32>
    %18 = vector.broadcast %4 : vector<1x256xf32> to vector<8x256xf32>
    %19 = arith.mulf %17, %18 : vector<8x256xf32>
    %c255_i32 = arith.constant 255 : i32
    %20 = tpu.dynamic_rotate %15 by %c255_i32 dim 1 : vector<8x256xf32>, i32 -> vector<8x256xf32>
    %21 = vector.broadcast %5 : vector<1x256xf32> to vector<8x256xf32>
    %22 = arith.mulf %20, %21 : vector<8x256xf32>
    %c1_i32_3 = arith.constant 1 : i32
    %23 = tpu.dynamic_rotate %16 by %c1_i32_3 dim 1 : vector<8x256xf32>, i32 -> vector<8x256xf32>
    %24 = vector.broadcast %4 : vector<1x256xf32> to vector<8x256xf32>
    %25 = arith.mulf %23, %24 : vector<8x256xf32>
    %c255_i32_4 = arith.constant 255 : i32
    %26 = tpu.dynamic_rotate %16 by %c255_i32_4 dim 1 : vector<8x256xf32>, i32 -> vector<8x256xf32>
    %27 = vector.broadcast %5 : vector<1x256xf32> to vector<8x256xf32>
    %28 = arith.mulf %26, %27 : vector<8x256xf32>
    %29 = arith.subf %22, %19 : vector<8x256xf32>
    %30 = arith.addf %25, %28 : vector<8x256xf32>
    %cst_5 = arith.constant 5.000000e-01 : f32
    %31 = vector.broadcast %cst_5 : f32 to vector<8x256xf32>
    %32 = arith.mulf %31, %30 : vector<8x256xf32>
    %33 = arith.addf %16, %32 : vector<8x256xf32>
    %34 = arith.mulf %29, %29 : vector<8x256xf32>
    %35 = arith.mulf %33, %33 : vector<8x256xf32>
    %36 = arith.addf %34, %35 : vector<8x256xf32>
    %37 = math.sqrt %36 : vector<8x256xf32>
    %cst_6 = arith.constant dense<0.000000e+00> : vector<8xf32>
    %38 = vector.multi_reduction <add>, %37, %cst_6 [1] : vector<8x256xf32> to vector<8xf32>
    %39 = vector.shape_cast %38 : vector<8xf32> to vector<8x1xf32>
    %cst_7 = arith.constant 3.906250e-03 : f32
    %40 = vector.broadcast %cst_7 : f32 to vector<8x1xf32>
    %41 = arith.mulf %39, %40 : vector<8x1xf32>
    %cst_8 = arith.constant dense<0.000000e+00> : vector<8xf32>
    %42 = vector.multi_reduction <add>, %36, %cst_8 [1] : vector<8x256xf32> to vector<8xf32>
    %43 = vector.shape_cast %42 : vector<8xf32> to vector<8x1xf32>
    %cst_9 = arith.constant 3.906250e-03 : f32
    %44 = vector.broadcast %cst_9 : f32 to vector<8x1xf32>
    %45 = arith.mulf %43, %44 : vector<8x1xf32>
    %46 = arith.mulf %41, %41 : vector<8x1xf32>
    %47 = arith.subf %45, %46 : vector<8x1xf32>
    %cst_10 = arith.constant 0.000000e+00 : f32
    %48 = vector.broadcast %cst_10 : f32 to vector<8x1xf32>
    %49 = arith.maximumf %47, %48 : vector<8x1xf32>
    %50 = math.sqrt %49 : vector<8x1xf32>
    %c0_11 = arith.constant 0 : index
    %c0_12 = arith.constant 0 : index
    %51 = vector.load %arg3[%c0_11, %c0_12] : memref<8x1xf32, #tpu.memory_space<vmem>>, vector<8x1xf32>
    tpu.vector_store %arg3[%c0_11, %c0_12], %50 {strides = array<i32>} : memref<8x1xf32, #tpu.memory_space<vmem>>, vector<8x1xf32>,
    return
  }
  func.func @transform_0(%arg0: i32) -> (i32, i32) {
    %c0_i32 = arith.constant 0 : i32
    %c0_i32_0 = arith.constant 0 : i32
    %c0_i32_1 = arith.constant 0 : i32
    return %c0_i32, %c0_i32_0 : i32, i32
  }
  func.func @transform_1(%arg0: i32) -> (i32, i32) {
    %c0_i32 = arith.constant 0 : i32
    %c0_i32_0 = arith.constant 0 : i32
    return %arg0, %c0_i32 : i32, i32
  }
  func.func @transform_2(%arg0: i32) -> (i32, i32) {
    %c0_i32 = arith.constant 0 : i32
    %c0_i32_0 = arith.constant 0 : i32
    return %arg0, %c0_i32 : i32, i32
  }
}

</mosaic_0001>

<llo_original>
// kernel: tpu_custom_call.1
$region0: #{tpu_custom_call.1}
  #allocation0 [shape = 'u32[]', space=smem, size = 0x4, offset = 0x4, fixed_abs, tag = 'smem constant byte address 0x4 - core index']
  #allocation1 [shape = 'u32[144,128]{1,0:T(1,128)}', space=vmem, size = 0x12000, scoped, tag = 'internal scratch']
  %s0 = inlined_call_operand.hbm [shape: f32[4,256], index: 0, kind: input, shape index: {}]
  %s1 = inlined_call_operand.hbm [shape: f32[8,256], index: 1, kind: input, shape index: {}]
  %s2 = inlined_call_operand.vmem [shape: f32[8,1], index: 2, kind: output, shape index: {}]
  %s3 = sld [smem:[#allocation0]]
  $region26: #{tpu_custom_call.1} parent=0
    _
  %s5 = ssub.s32 1, %s3
  %s6 = scalar_select 0, %s5, %s3
  $region1: #{tpu_custom_call.1} parent=0
    #allocation2 [shape = 'u8[4096]{0}', space=vmem, size = 0x1000, scoped, tag = 'input window, operand 0, single buffered']
    #allocation3 [shape = 's32[1]{0}', space=sflag, size = 0x4, scoped, tag = 'scoped memory for tpu_custom_call.1']
    #allocation4 [shape = 'u8[8192]{0}', space=vmem, size = 0x2000, scoped, tag = 'input window, operand 1, single buffered']
    #allocation5 [shape = 's32[1]{0}', space=sflag, size = 0x4, scoped, tag = 'scoped memory for tpu_custom_call.1']
    %7 = vsyncpa [#allocation3], 0
    %8 = vsyncpa [#allocation5], 0
    // Predicated region
    $region2: #{tpu_custom_call.1} parent=1 // pred_check
      _
    $region3: #{tpu_custom_call.1} parent=1 // pred_check_branch
      %10 = sbr.rel (0) target = $region5
    $region4: #{tpu_custom_call.1} parent=1 // pred_region
      %s12 = ssub.s32 128, 128
      %13 = vsyncadd [#allocation3], %s12
      %s15 = sshll.u32 [#allocation2], 4
      %s16 = int_to_ptr.vmem [resolvable:$true] %s15
      %18 = dma.hbm_to_vmem [thread:$0]  %s0, 128, %s16, [#allocation3]
    $region5: #{tpu_custom_call.1} parent=1 // pred_fallthru
      _
    // Predicated region
    $region6: #{tpu_custom_call.1} parent=1 // pred_check
      _
    $region7: #{tpu_custom_call.1} parent=1 // pred_check_branch
      %20 = sbr.rel (0) target = $region9
    $region8: #{tpu_custom_call.1} parent=1 // pred_region
      %s22 = ssub.s32 256, 256
      %23 = vsyncadd [#allocation5], %s22
      %s25 = sshll.u32 [#allocation4], 4
      %s26 = int_to_ptr.vmem [resolvable:$true] %s25
      %28 = dma.hbm_to_vmem [thread:$0]  %s1, 256, %s26, [#allocation5]
    $region9: #{tpu_custom_call.1} parent=1 // pred_fallthru
      _
    // Predicated region
    $region10: #{tpu_custom_call.1} parent=1 // pred_check
      _
    $region11: #{tpu_custom_call.1} parent=1 // pred_check_branch
      %30 = sbr.rel (0) target = $region13
    $region12: #{tpu_custom_call.1} parent=1 // pred_region
      %31 = dma.done [#allocation3], 128
    $region13: #{tpu_custom_call.1} parent=1 // pred_fallthru
      _
    // Predicated region
    $region14: #{tpu_custom_call.1} parent=1 // pred_check
      _
    $region15: #{tpu_custom_call.1} parent=1 // pred_check_branch
      %33 = sbr.rel (0) target = $region17
    $region16: #{tpu_custom_call.1} parent=1 // pred_region
      %34 = dma.done [#allocation5], 256
    $region17: #{tpu_custom_call.1} parent=1 // pred_fallthru
      _
    %v35 = vld [vmem:[#allocation4] sm:$0xff]
    %v36 = vld [vmem:[#allocation4 + $0x8] sm:$0xff]
    %v37 = vld [vmem:[#allocation2] sm:$0xff]
    %38 = vrot.lane.b32.xlu0 %v35, 16
    %v39 = vpop.permute.xlu0 %38
    %40 = vrot.lane.b32.xlu0 %v36, 16
    %v41 = vpop.permute.xlu0 %40
    %v42 = vlaneseq
    %v43 = vand.u32 %v42, 127
    %vm44 = vcmp.lt.s32.totalorder %v43, 16
    %v45 = vsel %vm44, %v39, %v41
    %v46 = vsel %vm44, %v41, %v39
    %v48 = vlaneseq
    %v49 = vshrl.u32 %v48, 7
    %v50 = vsub.s32 0, %v49
    %v51 = vrot.slane %v37, %v50
    %v52 = vlaneseq
    %v53 = vshrl.u32 %v52, 7
    %v54 = vsub.s32 4, %v53
    %v55 = vrot.slane %v37, %v54
    %v58 = vlaneseq
    %v59 = vshrl.u32 %v58, 7
    %v60 = vsub.s32 0, %v59
    %v61 = vrot.slane %v51, %v60
    %v62 = vlaneseq
    %v63 = vshrl.u32 %v62, 7
    %v64 = vsub.s32 0, %v63
    %v65 = vrot.slane %v55, %v64
    %v66 = vmul.f32 %v46, %v61
    %v67 = vmul.f32 %v45, %v65
    %68 = vrot.lane.b32.xlu0 %v35, 112
    %v69 = vpop.permute.xlu0 %68
    %70 = vrot.lane.b32.xlu0 %v36, 112
    %v71 = vpop.permute.xlu0 %70
    %vm72 = vcmp.lt.s32.totalorder %v43, 112
    %v73 = vsel %vm72, %v69, %v71
    %v74 = vsel %vm72, %v71, %v69
    %v75 = vlaneseq
    %v76 = vshrl.u32 %v75, 7
    %v77 = vsub.s32 1, %v76
    %v78 = vrot.slane %v37, %v77
    %v79 = vlaneseq
    %v80 = vshrl.u32 %v79, 7
    %v81 = vsub.s32 5, %v80
    %v82 = vrot.slane %v37, %v81
    %v85 = vlaneseq
    %v86 = vshrl.u32 %v85, 7
    %v87 = vsub.s32 1, %v86
    %v88 = vrot.slane %v78, %v87
    %v89 = vlaneseq
    %v90 = vshrl.u32 %v89, 7
    %v91 = vsub.s32 1, %v90
    %v92 = vrot.slane %v82, %v91
    %v93 = vmul.f32 %v73, %v88
    %v94 = vmul.f32 %v74, %v92
    %v95 = vadd.f32 %v66, %v93
    %v96 = vadd.f32 %v67, %v94
    %v97 = vmul.f32 %v95, 0.5
    %v98 = vmul.f32 %v96, 0.5
    %v99 = vadd.f32 %v35, %v97
    %v100 = vadd.f32 %v36, %v98
    %v101 = vsub.f32 %v93, %v66
    %v102 = vsub.f32 %v94, %v67
    %103 = vrot.lane.b32.xlu0 %v99, 1
    %v104 = vpop.permute.xlu0 %103
    %105 = vrot.lane.b32.xlu0 %v100, 1
    %v106 = vpop.permute.xlu0 %105
    %vm107 = vcmp.lt.s32.totalorder %v43, 1
    %v108 = vsel %vm107, %v104, %v106
    %v109 = vsel %vm107, %v106, %v104
    %v110 = vlaneseq
    %v111 = vshrl.u32 %v110, 7
    %v112 = vsub.s32 2, %v111
    %v113 = vrot.slane %v37, %v112
    %v114 = vlaneseq
    %v115 = vshrl.u32 %v114, 7
    %v116 = vsub.s32 6, %v115
    %v117 = vrot.slane %v37, %v116
    %v120 = vlaneseq
    %v121 = vshrl.u32 %v120, 7
    %v122 = vsub.s32 2, %v121
    %v123 = vrot.slane %v113, %v122
    %v124 = vlaneseq
    %v125 = vshrl.u32 %v124, 7
    %v126 = vsub.s32 2, %v125
    %v127 = vrot.slane %v117, %v126
    %v128 = vmul.f32 %v109, %v123
    %v129 = vmul.f32 %v108, %v127
    %130 = vrot.lane.b32.xlu0 %v99, 127
    %v131 = vpop.permute.xlu0 %130
    %132 = vrot.lane.b32.xlu0 %v100, 127
    %v133 = vpop.permute.xlu0 %132
    %vm134 = vcmp.lt.s32.totalorder %v43, 127
    %v135 = vsel %vm134, %v131, %v133
    %v136 = vsel %vm134, %v133, %v131
    %v137 = vlaneseq
    %v138 = vshrl.u32 %v137, 7
    %v139 = vsub.s32 3, %v138
    %v140 = vrot.slane %v37, %v139
    %v141 = vlaneseq
    %v142 = vshrl.u32 %v141, 7
    %v143 = vsub.s32 7, %v142
    %v144 = vrot.slane %v37, %v143
    %v147 = vlaneseq
    %v148 = vshrl.u32 %v147, 7
    %v149 = vsub.s32 3, %v148
    %v150 = vrot.slane %v140, %v149
    %v151 = vlaneseq
    %v152 = vshrl.u32 %v151, 7
    %v153 = vsub.s32 3, %v152
    %v154 = vrot.slane %v144, %v153
    %v155 = vmul.f32 %v135, %v150
    %v156 = vmul.f32 %v136, %v154
    %157 = vrot.lane.b32.xlu0 %v101, 1
    %v158 = vpop.permute.xlu0 %157
    %159 = vrot.lane.b32.xlu0 %v102, 1
    %v160 = vpop.permute.xlu0 %159
    %v161 = vsel %vm107, %v158, %v160
    %v162 = vsel %vm107, %v160, %v158
    %v163 = vmul.f32 %v162, %v123
    %v164 = vmul.f32 %v161, %v127
    %165 = vrot.lane.b32.xlu0 %v101, 127
    %v166 = vpop.permute.xlu0 %165
    %167 = vrot.lane.b32.xlu0 %v102, 127
    %v168 = vpop.permute.xlu0 %167
    %v169 = vsel %vm134, %v166, %v168
    %v170 = vsel %vm134, %v168, %v166
    %v171 = vmul.f32 %v169, %v150
    %v172 = vmul.f32 %v170, %v154
    %v173 = vsub.f32 %v155, %v128
    %v174 = vsub.f32 %v156, %v129
    %v175 = vadd.f32 %v163, %v171
    %v176 = vadd.f32 %v164, %v172
    %v177 = vmul.f32 %v175, 0.5
    %v178 = vmul.f32 %v176, 0.5
    %v179 = vadd.f32 %v101, %v177
    %v180 = vadd.f32 %v102, %v178
    %v181 = vmul.f32 %v173, %v173
    %v182 = vmul.f32 %v174, %v174
    %v183 = vmul.f32 %v179, %v179
    %v184 = vmul.f32 %v180, %v180
    %v185 = vadd.f32 %v181, %v183
    %v186 = vadd.f32 %v182, %v184
    %v187 = vrsqrt.pop %v185
    %v188 = vmul.f32 %v185, %v187
    %vm189 = vcmp.eq.f32.partialorder %v185, inf
    %v190 = vsel %vm189, %v185, %v188
    %vm191 = vcmp.eq.f32.partialorder %v185, 0.0
    %v192 = vand.u32 %v185, 2147483648
    %v193 = vsel %vm191, %v192, %v190
    %v194 = vrsqrt.pop %v186
    %v195 = vmul.f32 %v186, %v194
    %vm196 = vcmp.eq.f32.partialorder %v186, inf
    %v197 = vsel %vm196, %v186, %v195
    %vm198 = vcmp.eq.f32.partialorder %v186, 0.0
    %v199 = vand.u32 %v186, 2147483648
    %v200 = vsel %vm198, %v199, %v197
    %v201 = vadd.f32 %v193, %v200
    %202 = vadd.xlane.f32.xlu0 %v201
    %v203 = vpop.xlane.xlu0 %202
    %v204 = vmul.f32 %v203, 0.00390625
    %v205 = vadd.f32 %v185, %v186
    %206 = vadd.xlane.f32.xlu0 %v205
    %v207 = vpop.xlane.xlu0 %206
    %v208 = vmul.f32 %v207, 0.00390625
    %v209 = vmul.f32 %v204, %v204
    %v210 = vsub.f32 %v208, %v209
    %v211 = vmax.f32 %v210, 0.0
    %v212 = vrsqrt.pop %v211
    %v213 = vmul.f32 %v211, %v212
    %vm214 = vcmp.eq.f32.partialorder %v211, inf
    %v215 = vsel %vm214, %v211, %v213
    %vm216 = vcmp.eq.f32.partialorder %v211, 0.0
    %v217 = vand.u32 %v211, 2147483648
    %v218 = vsel %vm216, %v217, %v215
    %vm219 = vcmask 7168
    %220 = vst.msk [vmem:[%s2] sm:$0xff] %vm219, %v218
    // Predicated region
    $region18: #{tpu_custom_call.1} parent=1 // pred_check
      _
    $region19: #{tpu_custom_call.1} parent=1 // pred_check_branch
      %222 = sbr.rel (0) target = $region21
    $region20: #{tpu_custom_call.1} parent=1 // pred_region
      _
    $region21: #{tpu_custom_call.1} parent=1 // pred_fallthru
      _
    // Predicated region
    $region22: #{tpu_custom_call.1} parent=1 // pred_check
      _
    $region23: #{tpu_custom_call.1} parent=1 // pred_check_branch
      %224 = sbr.rel (0) target = $region25
    $region24: #{tpu_custom_call.1} parent=1 // pred_region
      _
    $region25: #{tpu_custom_call.1} parent=1 // pred_fallthru
      _
    %225 = vsyncpa [#allocation3], 1
    %226 = vsyncpa [#allocation5], 1

</llo_original>
